<compile_context>
chip_gen: v5e
topology: v5e:2x2
jax: 0.10.0
libtpu: 0.0.40
codegen_flags: <defaults>
</compile_context>

<pallas_src>
import math
from functools import partial

import jax
import jax.numpy as jnp
from jax import lax
from jax.experimental import pallas as pl
from jax.experimental.pallas import tpu as pltpu


# --------------------- single-pass kernel (Tk fits in one tile) --------------
def _cross_attn_single_kernel(x_ref, enc_ref, wq_ref, bq_ref, wkv_ref, bkv_ref,
                              o_ref, *, head_dim: int, compute_dtype):
    # x_ref : (Bblk, Tq, D)   enc_ref : (Bblk, Tk, D)
    # wq_ref: (D, H) bq_ref: (1, H)   wkv_ref: (D, 2H) bkv_ref: (1, 2H)
    bblk, tq, d = x_ref.shape
    _, tk, _ = enc_ref.shape
    h = head_dim

    # Q projection: fill the MXU M dimension with Bblk*Tq rows; fold 1/sqrt(H).
    x2 = x_ref[...].reshape(bblk * tq, d)
    q = jnp.dot(x2, wq_ref[...], preferred_element_type=jnp.float32)
    q = ((q + bq_ref[...]) * jnp.float32(1.0 / math.sqrt(h)))
    q = q.reshape(bblk, tq, h).astype(compute_dtype)

    # Fused K/V projection -> one (D, 2H) MXU push.
    enc2 = enc_ref[...].reshape(bblk * tk, d)
    kv = jnp.dot(enc2, wkv_ref[...], preferred_element_type=jnp.float32)
    kv = (kv + bkv_ref[...]).reshape(bblk, tk, 2 * h)
    k = kv[:, :, :h].astype(compute_dtype)
    v = kv[:, :, h:].astype(compute_dtype)

    # Scores: batched contraction over the feature dim (no k transpose).
    s = lax.dot_general(q, k,
                        dimension_numbers=(((2,), (2,)), ((0,), (0,))),
                        preferred_element_type=jnp.float32)   # (Bblk, Tq, Tk)

    # Exact softmax (single tile -> no running-state round trips), f32 math.
    m = jnp.max(s, axis=-1, keepdims=True)
    p = jnp.exp(s - m)
    inv_l = pl.reciprocal(jnp.sum(p, axis=-1, keepdims=True), approx=True)

    # TODO(synk): nn.Dropout(p=0.1) on attention weights is identity in eval
    # mode; training-mode dropout (pltpu.prng_random_bits mask) not applied.

    pv = lax.dot_general(p.astype(compute_dtype), v,
                         dimension_numbers=(((2,), (1,)), ((0,), (0,))),
                         preferred_element_type=jnp.float32)  # (Bblk, Tq, H)
    o_ref[...] = (pv * inv_l).astype(o_ref.dtype)


# --------------------- flash kernel (tiled Tk, online softmax) ---------------
def _cross_attn_flash_kernel(x_ref, enc_ref, wq_ref, bq_ref, wkv_ref, bkv_ref,
                             o_ref,
                             q_scr, m_scr, l_scr, acc_scr,
                             *, head_dim: int, compute_dtype):
    kt = pl.program_id(1)
    bblk, tq, d = x_ref.shape
    _, tkb, _ = enc_ref.shape
    h = head_dim

    # ---- once per batch block: Q projection + online-softmax state init -----
    @pl.when(kt == 0)
    def _():
        x2 = x_ref[...].reshape(bblk * tq, d)            # fill MXU M dimension
        q = jnp.dot(x2, wq_ref[...], preferred_element_type=jnp.float32)
        q = (q + bq_ref[...]) * jnp.float32(1.0 / math.sqrt(h))
        q_scr[...] = q.reshape(bblk, tq, h).astype(q_scr.dtype)
        m_scr[...] = jnp.full_like(m_scr, -jnp.inf)
        l_scr[...] = jnp.zeros_like(l_scr)
        acc_scr[...] = jnp.zeros_like(acc_scr)

    # ---- fused K/V projection for this Tk tile (one (D, 2H) matmul) ---------
    enc2 = enc_ref[...].reshape(bblk * tkb, d)
    kv = jnp.dot(enc2, wkv_ref[...], preferred_element_type=jnp.float32)
    kv = (kv + bkv_ref[...]).reshape(bblk, tkb, 2 * h)
    k = kv[:, :, :h].astype(compute_dtype)
    v = kv[:, :, h:].astype(compute_dtype)

    # ---- scores: contract last dims directly (no k transpose materialized) --
    q = q_scr[...]                                        # already compute dtype
    s = lax.dot_general(q, k,
                        dimension_numbers=(((2,), (2,)), ((0,), (0,))),
                        preferred_element_type=jnp.float32)   # (Bblk, Tq, Tkb)

    # ---- online softmax update (f32 on VPU/EUP) ------------------------------
    m_prev = m_scr[...]
    m_new = jnp.maximum(m_prev, jnp.max(s, axis=-1, keepdims=True))
    alpha = jnp.exp(m_prev - m_new)
    p = jnp.exp(s - m_new)
    l_scr[...] = alpha * l_scr[...] + jnp.sum(p, axis=-1, keepdims=True)
    pv = lax.dot_general(p.astype(compute_dtype), v,
                         dimension_numbers=(((2,), (1,)), ((0,), (0,))),
                         preferred_element_type=jnp.float32)  # (Bblk, Tq, H)
    acc_scr[...] = alpha * acc_scr[...] + pv
    m_scr[...] = m_new

    # ---- finalize on the last Tk tile ----------------------------------------
    @pl.when(kt == pl.num_programs(1) - 1)
    def _():
        inv_l = pl.reciprocal(l_scr[...], approx=True)        # EUP vrcp slot
        o_ref[...] = (acc_scr[...] * inv_l).astype(o_ref.dtype)


def _largest_divisor_at_most(n: int, cap: int) -> int:
    cap = max(1, min(n, cap))
    for c in range(cap, 0, -1):
        if n % c == 0:
            return c
    return 1


def _pick_tk_block(tk: int, cap: int) -> int:
    if tk <= cap:
        return tk
    for c in range(cap, 7, -1):
        if tk % c == 0 and c % 8 == 0:
            return c
    return tk  # fall back to the full (untiled) Tk


def cross_attention_head(x, encoder_out, params, *,
                         compute_dtype=jnp.bfloat16,
                         tk_block_cap=512,
                         target_rows=256):
    """x: (B, Tq, D); encoder_out: (B, Tk, D) -> (B, Tq, H), dtype of x."""
    B, Tq, D = x.shape
    _, Tk, _ = encoder_out.shape
    H = params["wq"].shape[1]
    out_dtype = x.dtype

    # Fused K/V weights -> one (D, 2H) projection matmul; biases stay f32.
    wq = params["wq"].astype(compute_dtype)
    wkv = jnp.concatenate([params["wk"], params["wv"]], axis=1).astype(compute_dtype)
    bq = params["bq"].reshape(1, H).astype(jnp.float32)
    bkv = jnp.concatenate([params["bk"], params["bv"]]).reshape(1, 2 * H).astype(jnp.float32)

    # bf16 MXU operands (halves DMA/VMEM of x/enc/weights); accumulation is f32.
    x_c = x.astype(compute_dtype)
    enc_c = encoder_out.astype(compute_dtype)

    # Batch rows per grid step so Bblk*Tq approaches the MXU M dimension (256).
    bblk = _largest_divisor_at_most(B, max(1, target_rows // max(Tq, 1)))
    # Tk tile for the online-softmax loop (bounds the scores tile in VMEM).
    tkb = _pick_tk_block(Tk, tk_block_cap)
    n_kt = Tk // tkb

    flops = 2 * B * (Tq * D * H + Tk * D * 2 * H + 2 * Tq * Tk * H)
    transcendentals = B * Tq * Tk
    it = jnp.dtype(compute_dtype).itemsize
    bytes_accessed = ((x_c.size + enc_c.size + wq.size + wkv.size) * it
                      + (bq.size + bkv.size) * 4
                      + B * Tq * H * jnp.dtype(out_dtype).itemsize)
    cost = pl.CostEstimate(flops=int(flops),
                           transcendentals=int(transcendentals),
                           bytes_accessed=int(bytes_accessed))

    if n_kt == 1:
        # ---- single-pass path: whole encoder sequence in one tile ----------
        kernel = partial(_cross_attn_single_kernel,
                         head_dim=H, compute_dtype=compute_dtype)
        grid_spec = pltpu.PrefetchScalarGridSpec(
            num_scalar_prefetch=0,
            grid=(B // bblk,),
            in_specs=[
                pl.BlockSpec((bblk, Tq, D), lambda b: (b, 0, 0)),     # x
                pl.BlockSpec((bblk, Tk, D), lambda b: (b, 0, 0)),     # encoder_out
                pl.BlockSpec((D, H), lambda b: (0, 0)),               # wq
                pl.BlockSpec((1, H), lambda b: (0, 0)),               # bq
                pl.BlockSpec((D, 2 * H), lambda b: (0, 0)),           # wkv (fused)
                pl.BlockSpec((1, 2 * H), lambda b: (0, 0)),           # bkv (fused)
            ],
            out_specs=pl.BlockSpec((bblk, Tq, H), lambda b: (b, 0, 0)),
            scratch_shapes=[])
        dim_sem = ("parallel",)
    else:
        # ---- flash path: online softmax over tiled Tk ("arbitrary", last) ----
        kernel = partial(_cross_attn_flash_kernel,
                         head_dim=H, compute_dtype=compute_dtype)
        grid_spec = pltpu.PrefetchScalarGridSpec(
            num_scalar_prefetch=0,
            grid=(B // bblk, n_kt),
            in_specs=[
                pl.BlockSpec((bblk, Tq, D), lambda b, kt: (b, 0, 0)),    # x
                pl.BlockSpec((bblk, tkb, D), lambda b, kt: (b, kt, 0)),  # encoder_out
                pl.BlockSpec((D, H), lambda b, kt: (0, 0)),              # wq
                pl.BlockSpec((1, H), lambda b, kt: (0, 0)),              # bq
                pl.BlockSpec((D, 2 * H), lambda b, kt: (0, 0)),          # wkv (fused)
                pl.BlockSpec((1, 2 * H), lambda b, kt: (0, 0)),          # bkv (fused)
            ],
            out_specs=pl.BlockSpec((bblk, Tq, H), lambda b, kt: (b, 0, 0)),
            scratch_shapes=[
                pltpu.VMEM((bblk, Tq, H), compute_dtype),  # pre-scaled Q
                pltpu.VMEM((bblk, Tq, 1), jnp.float32),    # running max m
                pltpu.VMEM((bblk, Tq, 1), jnp.float32),    # running denom l
                pltpu.VMEM((bblk, Tq, H), jnp.float32),    # unnormalized acc
            ])
        dim_sem = ("parallel", "arbitrary")

    return pl.pallas_call(
        kernel,
        out_shape=jax.ShapeDtypeStruct((B, Tq, H), out_dtype),
        grid_spec=grid_spec,
        compiler_params=pltpu.CompilerParams(
            dimension_semantics=dim_sem,
            vmem_limit_bytes=48 * 1024 * 1024),   # headroom vs v7x's 64 MiB VMEM
        cost_estimate=cost,
    )(x_c, enc_c, wq, bq, wkv, bkv)


def init_params(key, d_model: int, head_dim: int):
    """Deterministic nn.Linear-style init (uniform +/- 1/sqrt(fan_in))."""
    ks = jax.random.split(key, 6)
    bound = 1.0 / math.sqrt(d_model)
    u = lambda k, shape: jax.random.uniform(k, shape, jnp.float32, -bound, bound)
    return {
        "wq": u(ks[0], (d_model, head_dim)), "bq": u(ks[1], (head_dim,)),
        "wk": u(ks[2], (d_model, head_dim)), "bk": u(ks[3], (head_dim,)),
        "wv": u(ks[4], (d_model, head_dim)), "bv": u(ks[5], (head_dim,)),
    }


def _reference(x, enc, p):
    # pure-JAX f32 reference of the PyTorch forward (eval mode)
    q = x @ p["wq"] + p["bq"]
    k = enc @ p["wk"] + p["bk"]
    v = enc @ p["wv"] + p["bv"]
    s = (q @ jnp.swapaxes(k, -2, -1)) / math.sqrt(k.shape[-1])
    w = jax.nn.softmax(s, axis=-1)
    return w @ v


if __name__ == "__main__":
    key = jax.random.PRNGKey(0)
    k_x, k_e, k_p, k_e2 = jax.random.split(key, 4)

    B, Tq, Tk, d_model, head_dim = 2, 8, 8, 32, 16
    x = jax.random.normal(k_x, (B, Tq, d_model), jnp.float32)
    encoder_out = jax.random.normal(k_e, (B, Tk, d_model), jnp.float32)
    params = init_params(k_p, d_model, head_dim)

    ref = _reference(x, encoder_out, params)

    # --- single-pass path, f32 MXU operands: tight parity with the reference ---
    out_f32 = jax.block_until_ready(
        cross_attention_head(x, encoder_out, params, compute_dtype=jnp.float32))
    assert out_f32.shape == (B, Tq, head_dim)
    assert jnp.allclose(out_f32, ref, atol=5e-3, rtol=5e-3)

    # --- single-pass path, bf16 MXU operands (default fast path) ---------------
    out_bf16 = jax.block_until_ready(cross_attention_head(x, encoder_out, params))
    assert out_bf16.shape == (B, Tq, head_dim)
    assert jnp.allclose(out_bf16, ref, atol=3e-2, rtol=3e-2)

    # --- flash (tiled-Tk) path: longer encoder sequence, forced small Tk tile ---
    Tk_long = 32
    encoder_long = jax.random.normal(k_e2, (B, Tk_long, d_model), jnp.float32)
    ref_long = _reference(x, encoder_long, params)

    out_flash_f32 = jax.block_until_ready(
        cross_attention_head(x, encoder_long, params,
                             compute_dtype=jnp.float32, tk_block_cap=16))
    assert out_flash_f32.shape == (B, Tq, head_dim)
    assert jnp.allclose(out_flash_f32, ref_long, atol=5e-3, rtol=5e-3)

    out_flash_bf16 = jax.block_until_ready(
        cross_attention_head(x, encoder_long, params, tk_block_cap=16))
    assert out_flash_bf16.shape == (B, Tq, head_dim)
    assert jnp.allclose(out_flash_bf16, ref_long, atol=3e-2, rtol=3e-2)

    print("KERNEL_OK")
</pallas_src>

<mosaic_0001>
module attributes {stable_mosaic.version = 11 : i64} {
  func.func @_cross_attn_single_kernel(%arg0: i32, %arg1: memref<2x8x32xf32, #tpu.memory_space<vmem>>, %arg2: memref<2x8x32xf32, #tpu.memory_space<vmem>>, %arg3: memref<32x16xf32, #tpu.memory_space<vmem>>, %arg4: memref<1x16xf32, #tpu.memory_space<vmem>>, %arg5: memref<32x32xf32, #tpu.memory_space<vmem>>, %arg6: memref<1x32xf32, #tpu.memory_space<vmem>>, %arg7: memref<2x8x16xf32, #tpu.memory_space<vmem>>) attributes {dimension_semantics = [#tpu.dimension_semantics<parallel>], iteration_bounds = array<i64: 1>, scalar_prefetch = 0 : i64, scratch_operands = 0 : i64, tpu.core_type = #tpu.core_type<tc>, window_params = [{transform_indices = @transform_0, window_bounds = array<i64: 2, 8, 32>}, {transform_indices = @transform_1, window_bounds = array<i64: 2, 8, 32>}, {pipeline_mode = #tpu.pipeline_mode<synchronous>, transform_indices = @transform_2, window_bounds = array<i64: 32, 16>}, {pipeline_mode = #tpu.pipeline_mode<synchronous>, transform_indices = @transform_3, window_bounds = array<i64: 1, 16>}, {pipeline_mode = #tpu.pipeline_mode<synchronous>, transform_indices = @transform_4, window_bounds = array<i64: 32, 32>}, {pipeline_mode = #tpu.pipeline_mode<synchronous>, transform_indices = @transform_5, window_bounds = array<i64: 1, 32>}, {transform_indices = @transform_6, window_bounds = array<i64: 2, 8, 16>}]} {
    %c0 = arith.constant 0 : index
    %c0_0 = arith.constant 0 : index
    %c0_1 = arith.constant 0 : index
    %0 = vector.load %arg1[%c0, %c0_0, %c0_1] : memref<2x8x32xf32, #tpu.memory_space<vmem>>, vector<2x8x32xf32>
    %1 = vector.shape_cast %0 : vector<2x8x32xf32> to vector<16x32xf32>
    %c0_2 = arith.constant 0 : index
    %c0_3 = arith.constant 0 : index
    %2 = vector.load %arg3[%c0_2, %c0_3] : memref<32x16xf32, #tpu.memory_space<vmem>>, vector<32x16xf32>
    %cst = arith.constant dense<0.000000e+00> : vector<16x16xf32>
    %3 = tpu.matmul %1, %2, %cst {dimension_numbers = #tpu.dot_dimension_numbers<[1], [0], [0], [1], [0, 0, 1, 1], [], []>} : vector<16x32xf32>, vector<32x16xf32>, vector<16x16xf32> -> vector<16x16xf32>
    %c0_4 = arith.constant 0 : index
    %c0_5 = arith.constant 0 : index
    %4 = vector.load %arg4[%c0_4, %c0_5] : memref<1x16xf32, #tpu.memory_space<vmem>>, vector<1x16xf32>
    %5 = vector.broadcast %4 : vector<1x16xf32> to vector<16x16xf32>
    %6 = arith.addf %3, %5 : vector<16x16xf32>
    %cst_6 = arith.constant 2.500000e-01 : f32
    %7 = vector.broadcast %cst_6 : f32 to vector<16x16xf32>
    %8 = arith.mulf %6, %7 : vector<16x16xf32>
    %9 = vector.shape_cast %8 : vector<16x16xf32> to vector<2x8x16xf32>
    %c0_7 = arith.constant 0 : index
    %c0_8 = arith.constant 0 : index
    %c0_9 = arith.constant 0 : index
    %10 = vector.load %arg2[%c0_7, %c0_8, %c0_9] : memref<2x8x32xf32, #tpu.memory_space<vmem>>, vector<2x8x32xf32>
    %11 = vector.shape_cast %10 : vector<2x8x32xf32> to vector<16x32xf32>
    %c0_10 = arith.constant 0 : index
    %c0_11 = arith.constant 0 : index
    %12 = vector.load %arg5[%c0_10, %c0_11] : memref<32x32xf32, #tpu.memory_space<vmem>>, vector<32x32xf32>
    %cst_12 = arith.constant dense<0.000000e+00> : vector<16x32xf32>
    %13 = tpu.matmul %11, %12, %cst_12 {dimension_numbers = #tpu.dot_dimension_numbers<[1], [0], [0], [1], [0, 0, 1, 1], [], []>} : vector<16x32xf32>, vector<32x32xf32>, vector<16x32xf32> -> vector<16x32xf32>
    %c0_13 = arith.constant 0 : index
    %c0_14 = arith.constant 0 : index
    %14 = vector.load %arg6[%c0_13, %c0_14] : memref<1x32xf32, #tpu.memory_space<vmem>>, vector<1x32xf32>
    %15 = vector.broadcast %14 : vector<1x32xf32> to vector<16x32xf32>
    %16 = arith.addf %13, %15 : vector<16x32xf32>
    %17 = vector.shape_cast %16 : vector<16x32xf32> to vector<2x8x32xf32>
    %18 = vector.extract_strided_slice %17 {offsets = [0, 0, 0], sizes = [2, 8, 16], strides = [1, 1, 1]} : vector<2x8x32xf32> to vector<2x8x16xf32>
    %19 = vector.extract_strided_slice %17 {offsets = [0, 0, 16], sizes = [2, 8, 16], strides = [1, 1, 1]} : vector<2x8x32xf32> to vector<2x8x16xf32>
    %cst_15 = arith.constant dense<0.000000e+00> : vector<2x8x8xf32>
    %20 = tpu.matmul %9, %18, %cst_15 {dimension_numbers = #tpu.dot_dimension_numbers<[2], [2], [1], [1], [0, 0, 0, 1, 1, 1], [0], [0]>} : vector<2x8x16xf32>, vector<2x8x16xf32>, vector<2x8x8xf32> -> vector<2x8x8xf32>
    %cst_16 = arith.constant dense<0xFF800000> : vector<2x8xf32>
    %21 = vector.multi_reduction <maximumf>, %20, %cst_16 [2] : vector<2x8x8xf32> to vector<2x8xf32>
    %22 = vector.shape_cast %21 : vector<2x8xf32> to vector<2x8x1xf32>
    %23 = vector.broadcast %22 : vector<2x8x1xf32> to vector<2x8x8xf32>
    %24 = arith.subf %20, %23 : vector<2x8x8xf32>
    %25 = math.exp %24 : vector<2x8x8xf32>
    %cst_17 = arith.constant dense<0.000000e+00> : vector<2x8xf32>
    %26 = vector.multi_reduction <add>, %25, %cst_17 [2] : vector<2x8x8xf32> to vector<2x8xf32>
    %27 = vector.shape_cast %26 : vector<2x8xf32> to vector<2x8x1xf32>
    %28 = tpu.reciprocal %27 {approx = true} : vector<2x8x1xf32> -> vector<2x8x1xf32>
    %cst_18 = arith.constant dense<0.000000e+00> : vector<2x8x16xf32>
    %29 = tpu.matmul %25, %19, %cst_18 {dimension_numbers = #tpu.dot_dimension_numbers<[2], [1], [1], [2], [0, 0, 0, 1, 1, 2], [0], [0]>} : vector<2x8x8xf32>, vector<2x8x16xf32>, vector<2x8x16xf32> -> vector<2x8x16xf32>
    %30 = vector.broadcast %28 : vector<2x8x1xf32> to vector<2x8x16xf32>
    %31 = arith.mulf %29, %30 : vector<2x8x16xf32>
    %c0_19 = arith.constant 0 : index
    %c0_20 = arith.constant 0 : index
    %c0_21 = arith.constant 0 : index
    %32 = vector.load %arg7[%c0_19, %c0_20, %c0_21] : memref<2x8x16xf32, #tpu.memory_space<vmem>>, vector<2x8x16xf32>
    tpu.vector_store %arg7[%c0_19, %c0_20, %c0_21], %31 {strides = array<i32>} : memref<2x8x16xf32, #tpu.memory_space<vmem>>, vector<2x8x16xf32>,
    return
  }
  func.func @transform_0(%arg0: i32) -> (i32, i32, i32) {
    %c0_i32 = arith.constant 0 : i32
    %c0_i32_0 = arith.constant 0 : i32
    %c0_i32_1 = arith.constant 0 : i32
    return %arg0, %c0_i32, %c0_i32_0 : i32, i32, i32
  }
  func.func @transform_1(%arg0: i32) -> (i32, i32, i32) {
    %c0_i32 = arith.constant 0 : i32
    %c0_i32_0 = arith.constant 0 : i32
    %c0_i32_1 = arith.constant 0 : i32
    return %arg0, %c0_i32, %c0_i32_0 : i32, i32, i32
  }
  func.func @transform_2(%arg0: i32) -> (i32, i32) {
    %c0_i32 = arith.constant 0 : i32
    %c0_i32_0 = arith.constant 0 : i32
    %c0_i32_1 = arith.constant 0 : i32
    return %c0_i32, %c0_i32_0 : i32, i32
  }
  func.func @transform_3(%arg0: i32) -> (i32, i32) {
    %c0_i32 = arith.constant 0 : i32
    %c0_i32_0 = arith.constant 0 : i32
    %c0_i32_1 = arith.constant 0 : i32
    return %c0_i32, %c0_i32_0 : i32, i32
  }
  func.func @transform_4(%arg0: i32) -> (i32, i32) {
    %c0_i32 = arith.constant 0 : i32
    %c0_i32_0 = arith.constant 0 : i32
    %c0_i32_1 = arith.constant 0 : i32
    return %c0_i32, %c0_i32_0 : i32, i32
  }
  func.func @transform_5(%arg0: i32) -> (i32, i32) {
    %c0_i32 = arith.constant 0 : i32
    %c0_i32_0 = arith.constant 0 : i32
    %c0_i32_1 = arith.constant 0 : i32
    return %c0_i32, %c0_i32_0 : i32, i32
  }
  func.func @transform_6(%arg0: i32) -> (i32, i32, i32) {
    %c0_i32 = arith.constant 0 : i32
    %c0_i32_0 = arith.constant 0 : i32
    %c0_i32_1 = arith.constant 0 : i32
    return %arg0, %c0_i32, %c0_i32_0 : i32, i32, i32
  }
}

</mosaic_0001>

<llo_original>
// kernel: tpu_custom_call.1
$region0: #{tpu_custom_call.1}
  #allocation0 [shape = 'u32[]', space=smem, size = 0x4, offset = 0x4, fixed_abs, tag = 'smem constant byte address 0x4 - core index']
  #allocation1 [shape = 'u32[72,128]{1,0:T(1,128)}', space=vmem, size = 0x9000, scoped, tag = 'internal scratch']
  %s0 = inlined_call_operand.vmem [shape: f32[2,8,32], index: 0, kind: input, shape index: {}]
  %s1 = inlined_call_operand.hbm [shape: f32[2,8,32], index: 1, kind: input, shape index: {}]
  %s2 = inlined_call_operand.vmem [shape: f32[32,16], index: 2, kind: input, shape index: {}]
  %s3 = inlined_call_operand.vmem [shape: f32[1,16], index: 3, kind: input, shape index: {}]
  %s4 = inlined_call_operand.vmem [shape: f32[32,32], index: 4, kind: input, shape index: {}]
  %s5 = inlined_call_operand.vmem [shape: f32[1,32], index: 5, kind: input, shape index: {}]
  %s6 = inlined_call_operand.hbm [shape: f32[2,8,16], index: 6, kind: output, shape index: {}]
  %s7 = sld [smem:[#allocation0]]
  $region38: #{tpu_custom_call.1} parent=0
    _
  %s9 = ssub.s32 1, %s7
  %s10 = scalar_select 0, %s9, %s7
  $region1: #{tpu_custom_call.1} parent=0
    #allocation2 [shape = 'u8[8192]{0}', space=vmem, size = 0x2000, scoped, tag = 'input window, operand 1, single buffered']
    #allocation3 [shape = 's32[1]{0}', space=sflag, size = 0x4, scoped, tag = 'scoped memory for tpu_custom_call.1']
    #allocation4 [shape = 's32[1]{0}', space=sflag, size = 0x4, scoped, tag = 'scoped memory for tpu_custom_call.1']
    #allocation5 [shape = 'u8[8192]{0}', space=vmem, size = 0x2000, scoped, tag = 'output window, operand 0, single buffered']
    %11 = vsyncpa [#allocation3], 0
    %12 = vsyncpa [#allocation4], 0
    // Predicated region
    $region2: #{tpu_custom_call.1} parent=1 // pred_check
      _
    $region3: #{tpu_custom_call.1} parent=1 // pred_check_branch
      %14 = sbr.rel (0) target = $region5
    $region4: #{tpu_custom_call.1} parent=1 // pred_region
      _
    $region5: #{tpu_custom_call.1} parent=1 // pred_fallthru
      _
    // Predicated region
    $region6: #{tpu_custom_call.1} parent=1 // pred_check
      _
    $region7: #{tpu_custom_call.1} parent=1 // pred_check_branch
      %16 = sbr.rel (0) target = $region9
    $region8: #{tpu_custom_call.1} parent=1 // pred_region
      %18 = vsyncadd [#allocation3], 0
      %s19 = sshll.u32 %s1, 4
      %s20 = int_to_ptr.hbm [resolvable:$true] %s19
      %s21 = sshll.u32 [#allocation2], 4
      %s22 = int_to_ptr.vmem [resolvable:$true] %s21
      %27 = dma.hbm_to_vmem [thread:$0]  %s20, 256, %s22, [#allocation3], 128, 128, 8
    $region9: #{tpu_custom_call.1} parent=1 // pred_fallthru
      _
    // Predicated region
    $region10: #{tpu_custom_call.1} parent=1 // pred_check
      _
    $region11: #{tpu_custom_call.1} parent=1 // pred_check_branch
      %29 = sbr.rel (0) target = $region13
    $region12: #{tpu_custom_call.1} parent=1 // pred_region
      _
    $region13: #{tpu_custom_call.1} parent=1 // pred_fallthru
      _
    // Predicated region
    $region14: #{tpu_custom_call.1} parent=1 // pred_check
      _
    $region15: #{tpu_custom_call.1} parent=1 // pred_check_branch
      %31 = sbr.rel (0) target = $region17
    $region16: #{tpu_custom_call.1} parent=1 // pred_region
      _
    $region17: #{tpu_custom_call.1} parent=1 // pred_fallthru
      _
    // Predicated region
    $region18: #{tpu_custom_call.1} parent=1 // pred_check
      _
    $region19: #{tpu_custom_call.1} parent=1 // pred_check_branch
      %33 = sbr.rel (0) target = $region21
    $region20: #{tpu_custom_call.1} parent=1 // pred_region
      _
    $region21: #{tpu_custom_call.1} parent=1 // pred_fallthru
      _
    // Predicated region
    $region22: #{tpu_custom_call.1} parent=1 // pred_check
      _
    $region23: #{tpu_custom_call.1} parent=1 // pred_check_branch
      %35 = sbr.rel (0) target = $region25
    $region24: #{tpu_custom_call.1} parent=1 // pred_region
      _
    $region25: #{tpu_custom_call.1} parent=1 // pred_fallthru
      _
    // Predicated region
    $region26: #{tpu_custom_call.1} parent=1 // pred_check
      _
    $region27: #{tpu_custom_call.1} parent=1 // pred_check_branch
      %37 = sbr.rel (0) target = $region29
    $region28: #{tpu_custom_call.1} parent=1 // pred_region
      %39 = dma.done [#allocation3], 256
    $region29: #{tpu_custom_call.1} parent=1 // pred_fallthru
      _
    %v40 = vld [vmem:[%s0] sm:$0xff]
    %v41 = vld [vmem:[%s0 + $0x8] sm:$0xff]
    %v42 = vld [vmem:[%s2] sm:$0xff]
    %v43 = vld [vmem:[%s2 + $0x8] sm:$0xff]
    %v44 = vld [vmem:[%s2 + $0x10] sm:$0xff]
    %v45 = vld [vmem:[%s2 + $0x18] sm:$0xff]
    %v46 = vld [vmem:[%s3] sm:$0x1]
    %v48 = vperm.slane %v46, 0
    %vm50 = vcmask 261120
    %v52 = vsel %vm50, %v40, 0
    %v55 = vsel %vm50, %v41, 0
    %57 = vmatpush.msra.mxu0 0.0
    %58 = vmatpush.msra.mxu0 0.0
    %59 = vmatpush.msra.mxu0 0.0
    %60 = vmatpush.msra.mxu0 0.0
    %61 = vmatpush.msra.mxu0 0.0
    %62 = vmatpush.msra.mxu0 0.0
    %63 = vmatpush.msra.mxu0 0.0
    %64 = vmatpush.msra.mxu0 0.0
    %65 = vmatpush.msra.mxu0 0.0
    %66 = vmatpush.msra.mxu0 0.0
    %67 = vmatpush.msra.mxu0 0.0
    %68 = vmatpush.msra.mxu0 0.0
    %69 = vmatpush.msra.mxu0 %v45
    %70 = vmatpush.msra.mxu0 %v44
    %71 = vmatpush.msra.mxu0 %v43
    %72 = vmatpush.msra.mxu0 %v42
    %73 = vmatmul.f32.gmra.mxu0 %v52
    %v74 = vpop.f32.mrf.mxu0
    %v75 = vadd.f32 %v48, %v74
    %76 = vmatmul.f32.gmra.mxu0 %v55
    %v77 = vpop.f32.mrf.mxu0
    %v78 = vadd.f32 %v48, %v77
    %79 = vdwg.mxu0
    %v80 = vmul.f32 %v75, 0.25
    %v81 = vmul.f32 %v78, 0.25
    %v82 = vld [vmem:[#allocation2] sm:$0xff]
    %v83 = vld [vmem:[#allocation2 + $0x8] sm:$0xff]
    %v84 = vld [vmem:[%s4] sm:$0xff]
    %v85 = vld [vmem:[%s4 + $0x8] sm:$0xff]
    %v86 = vld [vmem:[%s4 + $0x10] sm:$0xff]
    %v87 = vld [vmem:[%s4 + $0x18] sm:$0xff]
    %v88 = vld [vmem:[%s5] sm:$0x1]
    %v90 = vperm.slane %v88, 0
    %v93 = vsel %vm50, %v82, 0
    %v96 = vsel %vm50, %v83, 0
    %98 = vmatpush.msra.mxu0 0.0
    %99 = vmatpush.msra.mxu0 0.0
    %100 = vmatpush.msra.mxu0 0.0
    %101 = vmatpush.msra.mxu0 0.0
    %102 = vmatpush.msra.mxu0 0.0
    %103 = vmatpush.msra.mxu0 0.0
    %104 = vmatpush.msra.mxu0 0.0
    %105 = vmatpush.msra.mxu0 0.0
    %106 = vmatpush.msra.mxu0 0.0
    %107 = vmatpush.msra.mxu0 0.0
    %108 = vmatpush.msra.mxu0 0.0
    %109 = vmatpush.msra.mxu0 0.0
    %110 = vmatpush.msra.mxu0 %v87
    %111 = vmatpush.msra.mxu0 %v86
    %112 = vmatpush.msra.mxu0 %v85
    %113 = vmatpush.msra.mxu0 %v84
    %114 = vmatmul.f32.gmra.mxu0 %v93
    %v115 = vpop.f32.mrf.mxu0
    %v116 = vadd.f32 %v90, %v115
    %117 = vmatmul.f32.gmra.mxu0 %v96
    %v118 = vpop.f32.mrf.mxu0
    %v119 = vadd.f32 %v90, %v118
    %120 = vdwg.mxu0
    %vm121 = vcmask 130048
    %v123 = vsel %vm121, %v80, 0
    %v126 = vsel %vm121, %v116, 0
    %128 = vmatpush.xpose.msra.mxu0 0.0
    %129 = vmatpush.xpose.msra.mxu0 0.0
    %130 = vmatpush.xpose.msra.mxu0 0.0
    %131 = vmatpush.xpose.msra.mxu0 0.0
    %132 = vmatpush.xpose.msra.mxu0 0.0
    %133 = vmatpush.xpose.msra.mxu0 0.0
    %134 = vmatpush.xpose.msra.mxu0 0.0
    %135 = vmatpush.xpose.msra.mxu0 0.0
    %136 = vmatpush.xpose.msra.mxu0 0.0
    %137 = vmatpush.xpose.msra.mxu0 0.0
    %138 = vmatpush.xpose.msra.mxu0 0.0
    %139 = vmatpush.xpose.msra.mxu0 0.0
    %140 = vmatpush.xpose.msra.mxu0 0.0
    %141 = vmatpush.xpose.msra.mxu0 0.0
    %142 = vmatpush.xpose.msra.mxu0 0.0
    %143 = vmatpush.xpose.msra.mxu0 %v126
    %144 = vmatmul.f32.gmra.mxu0 %v123
    %v145 = vpop.f32.mrf.mxu0
    %v146 = vadd.f32 0.0, %v145
    %147 = vdwg.mxu0
    %v149 = vsel %vm121, %v81, 0
    %v152 = vsel %vm121, %v119, 0
    %154 = vmatpush.xpose.msra.mxu0 0.0
    %155 = vmatpush.xpose.msra.mxu0 0.0
    %156 = vmatpush.xpose.msra.mxu0 0.0
    %157 = vmatpush.xpose.msra.mxu0 0.0
    %158 = vmatpush.xpose.msra.mxu0 0.0
    %159 = vmatpush.xpose.msra.mxu0 0.0
    %160 = vmatpush.xpose.msra.mxu0 0.0
    %161 = vmatpush.xpose.msra.mxu0 0.0
    %162 = vmatpush.xpose.msra.mxu0 0.0
    %163 = vmatpush.xpose.msra.mxu0 0.0
    %164 = vmatpush.xpose.msra.mxu0 0.0
    %165 = vmatpush.xpose.msra.mxu0 0.0
    %166 = vmatpush.xpose.msra.mxu0 0.0
    %167 = vmatpush.xpose.msra.mxu0 0.0
    %168 = vmatpush.xpose.msra.mxu0 0.0
    %169 = vmatpush.xpose.msra.mxu0 %v152
    %170 = vmatmul.f32.gmra.mxu0 %v149
    %v171 = vpop.f32.mrf.mxu0
    %v172 = vadd.f32 0.0, %v171
    %173 = vdwg.mxu0
    %vm174 = vcmask 64512
    %v175 = vsel %vm174, %v146, -inf
    %176 = vmax.xlane.f32.xlu0 %v175
    %v177 = vpop.xlane.xlu0 %176
    %v178 = vsel %vm174, %v172, -inf
    %179 = vmax.xlane.f32.xlu0 %v178
    %v180 = vpop.xlane.xlu0 %179
    %v181 = vsub.f32 %v146, %v177
    %v182 = vsub.f32 %v172, %v180
    %v183 = vmul.f32 %v181, 1.442695
    %v184 = vpow.pop %v183
    %v185 = vmul.f32 %v182, 1.442695
    %v186 = vpow.pop %v185
    %v187 = vsel %vm174, %v184, 0.0
    %188 = vadd.xlane.f32.xlu0 %v187
    %v189 = vpop.xlane.xlu0 %188
    %v190 = vsel %vm174, %v186, 0.0
    %191 = vadd.xlane.f32.xlu0 %v190
    %v192 = vpop.xlane.xlu0 %191
    %v193 = vrcp.pop %v189
    %v194 = vrcp.pop %v192
    %195 = vrot.lane.b32.xlu0 %v116, 112
    %v196 = vpop.permute.xlu0 %195
    %v199 = vsel %vm174, %v184, 0
    %201 = vmatpush.msra.mxu0 0.0
    %202 = vmatpush.msra.mxu0 0.0
    %203 = vmatpush.msra.mxu0 0.0
    %204 = vmatpush.msra.mxu0 0.0
    %205 = vmatpush.msra.mxu0 0.0
    %206 = vmatpush.msra.mxu0 0.0
    %207 = vmatpush.msra.mxu0 0.0
    %208 = vmatpush.msra.mxu0 0.0
    %209 = vmatpush.msra.mxu0 0.0
    %210 = vmatpush.msra.mxu0 0.0
    %211 = vmatpush.msra.mxu0 0.0
    %212 = vmatpush.msra.mxu0 0.0
    %213 = vmatpush.msra.mxu0 0.0
    %214 = vmatpush.msra.mxu0 0.0
    %215 = vmatpush.msra.mxu0 0.0
    %216 = vmatpush.msra.mxu0 %v196
    %217 = vmatmul.f32.gmra.mxu0 %v199
    %v218 = vpop.f32.mrf.mxu0
    %v219 = vadd.f32 0.0, %v218
    %220 = vdwg.mxu0
    %221 = vrot.lane.b32.xlu0 %v119, 112
    %v222 = vpop.permute.xlu0 %221
    %v225 = vsel %vm174, %v186, 0
    %227 = vmatpush.msra.mxu0 0.0
    %228 = vmatpush.msra.mxu0 0.0
    %229 = vmatpush.msra.mxu0 0.0
    %230 = vmatpush.msra.mxu0 0.0
    %231 = vmatpush.msra.mxu0 0.0
    %232 = vmatpush.msra.mxu0 0.0
    %233 = vmatpush.msra.mxu0 0.0
    %234 = vmatpush.msra.mxu0 0.0
    %235 = vmatpush.msra.mxu0 0.0
    %236 = vmatpush.msra.mxu0 0.0
    %237 = vmatpush.msra.mxu0 0.0
    %238 = vmatpush.msra.mxu0 0.0
    %239 = vmatpush.msra.mxu0 0.0
    %240 = vmatpush.msra.mxu0 0.0
    %241 = vmatpush.msra.mxu0 0.0
    %242 = vmatpush.msra.mxu0 %v222
    %243 = vmatmul.f32.gmra.mxu0 %v225
    %v244 = vpop.f32.mrf.mxu0
    %v245 = vadd.f32 0.0, %v244
    %246 = vdwg.mxu0
    %v247 = vmul.f32 %v219, %v193
    %v248 = vmul.f32 %v245, %v194
    %249 = vst.msk [vmem:[#allocation5] sm:$0xff] %vm121, %v247
    %250 = vst.msk [vmem:[#allocation5 + $0x8] sm:$0xff] %vm121, %v248
    // Predicated region
    $region30: #{tpu_custom_call.1} parent=1 // pred_check
      _
    $region31: #{tpu_custom_call.1} parent=1 // pred_check_branch
      %252 = sbr.rel (0) target = $region33
    $region32: #{tpu_custom_call.1} parent=1 // pred_region
      %254 = vsyncadd [#allocation4], 0
      %s255 = sshll.u32 [#allocation5], 4
      %s256 = int_to_ptr.vmem [resolvable:$true] %s255
      %s257 = sshll.u32 %s6, 4
      %s258 = int_to_ptr.hbm [resolvable:$true] %s257
      %263 = dma.vmem_to_hbm [thread:$0]  %s256, 256, %s258, [#allocation4], 128, 128, 8
    $region33: #{tpu_custom_call.1} parent=1 // pred_fallthru
      _
    // Predicated region
    $region34: #{tpu_custom_call.1} parent=1 // pred_check
      _
    $region35: #{tpu_custom_call.1} parent=1 // pred_check_branch
      %265 = sbr.rel (0) target = $region37
    $region36: #{tpu_custom_call.1} parent=1 // pred_region
      %267 = dma.done [#allocation4], 256
    $region37: #{tpu_custom_call.1} parent=1 // pred_fallthru
      _
    %268 = vsyncpa [#allocation3], 1
    %269 = vsyncpa [#allocation4], 1

</llo_original>
